<compile_context>
chip_gen: v5e
topology: v5e:2x2
jax: 0.10.0
libtpu: 0.0.40
codegen_flags: <defaults>
</compile_context>

<pallas_src>
import math

import jax
import jax.numpy as jnp
from jax.experimental import pallas as pl
from jax.experimental.pallas import tpu as pltpu


def _pick_row_tile(h_out: int, w_out: int) -> int:
    """Largest row tile TH that divides H_out, gives >= 2 tiles (pipelining /
    megacore balance) and keeps the GEMM M dim (TH*W_out) <= 1024 so the f32
    accumulator stays within a handful of vregs."""
    for th in range(h_out, 0, -1):
        if h_out % th:
            continue
        if h_out // th >= 2 and th * w_out <= 1024:
            return th
    return h_out


def _vmem_capacity_bytes() -> int:
    try:
        info = pltpu.get_tpu_info()
        for name in ("vmem_capacity_bytes", "vmem_bytes", "vmem_size_bytes"):
            v = getattr(info, name, None)
            if v:
                return int(v)
    except Exception:
        pass
    return 64 * 1024 * 1024  # v7x per-TC size; conservative for v5e/v6e.


def conv2d_pallas(
    x: jax.Array,
    weight: jax.Array,
    stride: int = 1,
    padding: int = 0,
    compute_dtype=None,
) -> jax.Array:
    """Equivalent of F.conv2d(x, weight, stride=stride, padding=padding), bias=False."""
    N, C_in, H, W = x.shape
    C_out, C_in_w, K, K2 = weight.shape
    assert C_in_w == C_in and K == K2

    out_dtype = x.dtype
    if compute_dtype is not None:  # e.g. jnp.bfloat16 on v6e / v7x
        x = x.astype(compute_dtype)
        weight = weight.astype(compute_dtype)

    H_out = (H + 2 * padding - K) // stride + 1
    W_out = (W + 2 * padding - K) // stride + 1
    Hp, Wp = H + 2 * padding, W + 2 * padding
    CKK = C_in * K * K

    TH = _pick_row_tile(H_out, W_out)      # output rows per grid step
    HT = H_out // TH                       # number of row tiles
    M_tile = TH * W_out                    # GEMM M (lane axis of the output)
    TH_in = (TH - 1) * stride + K          # padded-image rows feeding one tile

    # NCHW -> NHWC once (makes the in-kernel im2col collapse layout-free).
    # Zero-padding is NOT done here; it is fused into the kernel.
    x_nhwc = jnp.transpose(x, (0, 2, 3, 1))

    # weight (C_out, C_in, K, K) -> (C_out, K, K, C_in) -> (C_out, K*K*C_in);
    # column order (kh*K + kw)*C_in + c matches the im2col slab below.
    w_flat = jnp.transpose(weight, (0, 2, 3, 1)).reshape(C_out, CKK)

    def kernel(x_ref, w_ref, o_ref, xp_ref, p_ref):
        # x_ref : (1, H, W, C_in)       unpadded image; block index is constant
        #                               in ht, so it is DMA'd once per image.
        # w_ref : (C_out, C_in*K*K)     resident across the whole grid.
        # o_ref : (1, C_out, TH*W_out)  lane-dense output row tile.
        # xp_ref: (Hp, Wp, C_in)        VMEM scratch: zero-padded image.
        # p_ref : (TH*W_out, C_in*K*K)  VMEM scratch: im2col slab.
        ht = pl.program_id(1)

        # ---- fused zero padding (no jnp.pad HBM pass in the wrapper).
        # Rebuilt every step (cheap VMEM-only work) so both grid axes may be
        # core-split "parallel"; for large images build it once per image under
        # @pl.when(ht == 0) with the row axis marked "arbitrary".
        if padding > 0:
            xp_ref[...] = jnp.zeros_like(xp_ref)
            xp_ref[pl.ds(padding, H), pl.ds(padding, W), :] = x_ref[0]
        else:
            xp_ref[...] = x_ref[0]

        # Padded-image rows feeding this tile (dynamic start on the untiled
        # Hp axis -> cheap).
        h0 = ht * (TH * stride)
        if (TH * stride) % 8 == 0:
            h0 = pl.multiple_of(h0, 8)
        rows = xp_ref[pl.ds(h0, TH_in), :, :]              # (TH_in, Wp, C_in)

        # ---- build the im2col slab:
        #   P[a*W_out + b, (kh*K + kw)*C_in + c] = xpad[h0 + a*s + kh, b*s + kw, c]
        # kw shift hoisted: K sublane-offset slices per tile (not K*K); the kh
        # shift is on an untiled dim and free.  (TH, W_out, C_in) ->
        # (TH*W_out, C_in) is a layout-free collapse when W_out % 8 == 0.
        for kw in range(K):
            if stride == 1:
                xw = rows[:, kw:kw + W_out, :]             # (TH_in, W_out, C_in)
            else:
                # stride > 1: contiguous slice of the value, then subsample
                # (avoids a strided pl.ds on the tiled Wp axis).
                xw = rows[:, kw:kw + (W_out - 1) * stride + 1:stride, :]
            for kh in range(K):
                if stride == 1:
                    win = xw[kh:kh + TH]                   # (TH, W_out, C_in)
                else:
                    win = xw[kh:kh + (TH - 1) * stride + 1:stride]
                col0 = (kh * K + kw) * C_in
                p_ref[:, col0:col0 + C_in] = win.reshape(M_tile, C_in)

        # ---- one MXU GEMM per tile: contraction length C_in*K*K, f32
        # accumulation, lane-dense (C_out, TH*W_out) result.
        acc = jax.lax.dot_general(
            w_ref[...],
            p_ref[...],
            dimension_numbers=(((1,), (1,)), ((), ())),
            preferred_element_type=jnp.float32,
        )
        o_ref[0] = acc.astype(o_ref.dtype)

    # ---- VMEM budget: account for sublane/lane padding of the blocks and
    # leave ~20% of physical VMEM as headroom (v7x has only 64 MiB per TC).
    itemsize = jnp.dtype(x_nhwc.dtype).itemsize
    sub = max(8, 32 // itemsize)

    def padded_bytes(shape):
        s = list(shape)
        s[-1] = -(-s[-1] // 128) * 128
        if len(s) >= 2:
            s[-2] = -(-s[-2] // sub) * sub
        n = 1
        for d in s:
            n *= d
        return n * itemsize

    need = (
        2 * padded_bytes((1, H, W, C_in))        # double-buffered input block
        + 2 * padded_bytes((C_out, CKK))         # weight block
        + 2 * padded_bytes((1, C_out, M_tile))   # double-buffered output block
        + padded_bytes((Hp, Wp, C_in))           # padded-image scratch
        + padded_bytes((M_tile, CKK))            # im2col slab scratch
    )
    safe_cap = int(0.8 * _vmem_capacity_bytes())
    vmem_limit = int(max(32 * 1024 * 1024, min(safe_cap, 4 * need + (8 << 20))))
    # TODO(synk): for images whose whole padded image no longer fits VMEM, add
    # a halo'd H-tile input BlockSpec instead of the whole-image-per-step block.

    out = pl.pallas_call(
        kernel,
        out_shape=jax.ShapeDtypeStruct((N, C_out, H_out * W_out), out_dtype),
        grid_spec=pltpu.PrefetchScalarGridSpec(
            num_scalar_prefetch=0,
            grid=(N, HT),
            in_specs=[
                pl.BlockSpec((1, H, W, C_in), lambda n, ht: (n, 0, 0, 0)),
                pl.BlockSpec((C_out, CKK), lambda n, ht: (0, 0)),
            ],
            out_specs=pl.BlockSpec((1, C_out, M_tile), lambda n, ht: (n, 0, ht)),
            scratch_shapes=[
                pltpu.VMEM((Hp, Wp, C_in), x_nhwc.dtype),
                pltpu.VMEM((M_tile, CKK), x_nhwc.dtype),
            ],
        ),
        compiler_params=pltpu.CompilerParams(
            dimension_semantics=("parallel", "parallel"),
            vmem_limit_bytes=vmem_limit,
        ),
    )(x_nhwc, w_flat)

    # (N, C_out, H_out*W_out) -> NCHW is a pure reshape (no transpose pass).
    return out.reshape(N, C_out, H_out, W_out)


def init_conv2d_weight(key, in_channels: int, out_channels: int, kernel_size: int) -> jax.Array:
    # Matches the PyTorch module: uniform(-sqrt(k), sqrt(k)), k = 1/(C_in * K^2)
    k = 1.0 / (in_channels * kernel_size ** 2)
    bound = math.sqrt(k)
    return jax.random.uniform(
        key,
        (out_channels, in_channels, kernel_size, kernel_size),
        dtype=jnp.float32,
        minval=-bound,
        maxval=bound,
    )


if __name__ == "__main__":
    key = jax.random.PRNGKey(0)
    kx, kw_key = jax.random.split(key)

    N, C_in, H, W = 2, 4, 16, 16
    C_out, K, stride, padding = 8, 3, 1, 1

    x = jax.random.normal(kx, (N, C_in, H, W), dtype=jnp.float32)
    weight = init_conv2d_weight(kw_key, C_in, C_out, K)

    out = conv2d_pallas(x, weight, stride=stride, padding=padding)
    out = jax.block_until_ready(out)

    # Reference check against XLA's conv (same semantics as F.conv2d, bias=False)
    ref = jax.lax.conv_general_dilated(
        x,
        weight,
        window_strides=(stride, stride),
        padding=[(padding, padding), (padding, padding)],
        dimension_numbers=("NCHW", "OIHW", "NCHW"),
    )
    assert out.shape == (N, C_out, H, W), out.shape
    assert jnp.allclose(out, ref, atol=1e-4, rtol=1e-4), "mismatch vs reference conv"

    print("KERNEL_OK")
</pallas_src>

<mosaic_0001>
module attributes {stable_mosaic.version = 11 : i64} {
  func.func @kernel(%arg0: i32, %arg1: i32, %arg2: memref<1x16x16x4xf32, #tpu.memory_space<vmem>>, %arg3: memref<8x36xf32, #tpu.memory_space<vmem>>, %arg4: memref<1x8x128xf32, #tpu.memory_space<vmem>>, %arg5: memref<18x18x4xf32, #tpu.memory_space<vmem>>, %arg6: memref<128x36xf32, #tpu.memory_space<vmem>>) attributes {dimension_semantics = [#tpu.dimension_semantics<parallel>, #tpu.dimension_semantics<parallel>], iteration_bounds = array<i64: 2, 2>, scalar_prefetch = 0 : i64, scratch_operands = 2 : i64, tpu.core_type = #tpu.core_type<tc>, window_params = [{transform_indices = @transform_0, window_bounds = array<i64: 1, 16, 16, 4>}, {pipeline_mode = #tpu.pipeline_mode<synchronous>, transform_indices = @transform_1, window_bounds = array<i64: 8, 36>}, {transform_indices = @transform_2, window_bounds = array<i64: 1, 8, 128>}]} {
    %cst = arith.constant 0.000000e+00 : f32
    %0 = vector.broadcast %cst : f32 to vector<18x18x4xf32>
    %c0 = arith.constant 0 : index
    %c0_0 = arith.constant 0 : index
    %c0_1 = arith.constant 0 : index
    %1 = vector.load %arg5[%c0, %c0_0, %c0_1] : memref<18x18x4xf32, #tpu.memory_space<vmem>>, vector<18x18x4xf32>
    tpu.vector_store %arg5[%c0, %c0_0, %c0_1], %0 {strides = array<i32>} : memref<18x18x4xf32, #tpu.memory_space<vmem>>, vector<18x18x4xf32>,
    %c0_2 = arith.constant 0 : index
    %c0_3 = arith.constant 0 : index
    %c0_4 = arith.constant 0 : index
    %c0_5 = arith.constant 0 : index
    %2 = vector.load %arg2[%c0_2, %c0_3, %c0_4, %c0_5] : memref<1x16x16x4xf32, #tpu.memory_space<vmem>>, vector<1x16x16x4xf32>
    %3 = vector.shape_cast %2 : vector<1x16x16x4xf32> to vector<16x16x4xf32>
    %c1 = arith.constant 1 : index
    %c1_6 = arith.constant 1 : index
    %c0_7 = arith.constant 0 : index
    %4 = vector.load %arg5[%c1, %c1_6, %c0_7] : memref<18x18x4xf32, #tpu.memory_space<vmem>>, vector<16x16x4xf32>
    tpu.vector_store %arg5[%c1, %c1_6, %c0_7], %3 {strides = array<i32>} : memref<18x18x4xf32, #tpu.memory_space<vmem>>, vector<16x16x4xf32>,
    %c8_i32 = arith.constant 8 : i32
    %5 = arith.muli %arg1, %c8_i32 : i32
    %6 = tpu.assume_multiple %5, 8 : i32
    %7 = arith.index_cast %6 : i32 to index
    %c0_8 = arith.constant 0 : index
    %c0_9 = arith.constant 0 : index
    %8 = vector.load %arg5[%7, %c0_8, %c0_9] : memref<18x18x4xf32, #tpu.memory_space<vmem>>, vector<10x18x4xf32>
    %9 = vector.extract_strided_slice %8 {offsets = [0, 0, 0], sizes = [10, 16, 4], strides = [1, 1, 1]} : vector<10x18x4xf32> to vector<10x16x4xf32>
    %10 = vector.extract_strided_slice %9 {offsets = [0, 0, 0], sizes = [8, 16, 4], strides = [1, 1, 1]} : vector<10x16x4xf32> to vector<8x16x4xf32>
    %11 = vector.shape_cast %10 : vector<8x16x4xf32> to vector<128x4xf32>
    %c0_10 = arith.constant 0 : index
    %c0_11 = arith.constant 0 : index
    %12 = vector.load %arg6[%c0_10, %c0_11] : memref<128x36xf32, #tpu.memory_space<vmem>>, vector<128x4xf32>
    tpu.vector_store %arg6[%c0_10, %c0_11], %11 {strides = array<i32>} : memref<128x36xf32, #tpu.memory_space<vmem>>, vector<128x4xf32>,
    %13 = vector.extract_strided_slice %9 {offsets = [1, 0, 0], sizes = [8, 16, 4], strides = [1, 1, 1]} : vector<10x16x4xf32> to vector<8x16x4xf32>
    %14 = vector.shape_cast %13 : vector<8x16x4xf32> to vector<128x4xf32>
    %c0_12 = arith.constant 0 : index
    %c12 = arith.constant 12 : index
    %15 = vector.load %arg6[%c0_12, %c12] : memref<128x36xf32, #tpu.memory_space<vmem>>, vector<128x4xf32>
    tpu.vector_store %arg6[%c0_12, %c12], %14 {strides = array<i32>} : memref<128x36xf32, #tpu.memory_space<vmem>>, vector<128x4xf32>,
    %16 = vector.extract_strided_slice %9 {offsets = [2, 0, 0], sizes = [8, 16, 4], strides = [1, 1, 1]} : vector<10x16x4xf32> to vector<8x16x4xf32>
    %17 = vector.shape_cast %16 : vector<8x16x4xf32> to vector<128x4xf32>
    %c0_13 = arith.constant 0 : index
    %c24 = arith.constant 24 : index
    %18 = vector.load %arg6[%c0_13, %c24] : memref<128x36xf32, #tpu.memory_space<vmem>>, vector<128x4xf32>
    tpu.vector_store %arg6[%c0_13, %c24], %17 {strides = array<i32>} : memref<128x36xf32, #tpu.memory_space<vmem>>, vector<128x4xf32>,
    %19 = vector.extract_strided_slice %8 {offsets = [0, 1, 0], sizes = [10, 16, 4], strides = [1, 1, 1]} : vector<10x18x4xf32> to vector<10x16x4xf32>
    %20 = vector.extract_strided_slice %19 {offsets = [0, 0, 0], sizes = [8, 16, 4], strides = [1, 1, 1]} : vector<10x16x4xf32> to vector<8x16x4xf32>
    %21 = vector.shape_cast %20 : vector<8x16x4xf32> to vector<128x4xf32>
    %c0_14 = arith.constant 0 : index
    %c4 = arith.constant 4 : index
    %22 = vector.load %arg6[%c0_14, %c4] : memref<128x36xf32, #tpu.memory_space<vmem>>, vector<128x4xf32>
    tpu.vector_store %arg6[%c0_14, %c4], %21 {strides = array<i32>} : memref<128x36xf32, #tpu.memory_space<vmem>>, vector<128x4xf32>,
    %23 = vector.extract_strided_slice %19 {offsets = [1, 0, 0], sizes = [8, 16, 4], strides = [1, 1, 1]} : vector<10x16x4xf32> to vector<8x16x4xf32>
    %24 = vector.shape_cast %23 : vector<8x16x4xf32> to vector<128x4xf32>
    %c0_15 = arith.constant 0 : index
    %c16 = arith.constant 16 : index
    %25 = vector.load %arg6[%c0_15, %c16] : memref<128x36xf32, #tpu.memory_space<vmem>>, vector<128x4xf32>
    tpu.vector_store %arg6[%c0_15, %c16], %24 {strides = array<i32>} : memref<128x36xf32, #tpu.memory_space<vmem>>, vector<128x4xf32>,
    %26 = vector.extract_strided_slice %19 {offsets = [2, 0, 0], sizes = [8, 16, 4], strides = [1, 1, 1]} : vector<10x16x4xf32> to vector<8x16x4xf32>
    %27 = vector.shape_cast %26 : vector<8x16x4xf32> to vector<128x4xf32>
    %c0_16 = arith.constant 0 : index
    %c28 = arith.constant 28 : index
    %28 = vector.load %arg6[%c0_16, %c28] : memref<128x36xf32, #tpu.memory_space<vmem>>, vector<128x4xf32>
    tpu.vector_store %arg6[%c0_16, %c28], %27 {strides = array<i32>} : memref<128x36xf32, #tpu.memory_space<vmem>>, vector<128x4xf32>,
    %29 = vector.extract_strided_slice %8 {offsets = [0, 2, 0], sizes = [10, 16, 4], strides = [1, 1, 1]} : vector<10x18x4xf32> to vector<10x16x4xf32>
    %30 = vector.extract_strided_slice %29 {offsets = [0, 0, 0], sizes = [8, 16, 4], strides = [1, 1, 1]} : vector<10x16x4xf32> to vector<8x16x4xf32>
    %31 = vector.shape_cast %30 : vector<8x16x4xf32> to vector<128x4xf32>
    %c0_17 = arith.constant 0 : index
    %c8 = arith.constant 8 : index
    %32 = vector.load %arg6[%c0_17, %c8] : memref<128x36xf32, #tpu.memory_space<vmem>>, vector<128x4xf32>
    tpu.vector_store %arg6[%c0_17, %c8], %31 {strides = array<i32>} : memref<128x36xf32, #tpu.memory_space<vmem>>, vector<128x4xf32>,
    %33 = vector.extract_strided_slice %29 {offsets = [1, 0, 0], sizes = [8, 16, 4], strides = [1, 1, 1]} : vector<10x16x4xf32> to vector<8x16x4xf32>
    %34 = vector.shape_cast %33 : vector<8x16x4xf32> to vector<128x4xf32>
    %c0_18 = arith.constant 0 : index
    %c20 = arith.constant 20 : index
    %35 = vector.load %arg6[%c0_18, %c20] : memref<128x36xf32, #tpu.memory_space<vmem>>, vector<128x4xf32>
    tpu.vector_store %arg6[%c0_18, %c20], %34 {strides = array<i32>} : memref<128x36xf32, #tpu.memory_space<vmem>>, vector<128x4xf32>,
    %36 = vector.extract_strided_slice %29 {offsets = [2, 0, 0], sizes = [8, 16, 4], strides = [1, 1, 1]} : vector<10x16x4xf32> to vector<8x16x4xf32>
    %37 = vector.shape_cast %36 : vector<8x16x4xf32> to vector<128x4xf32>
    %c0_19 = arith.constant 0 : index
    %c32 = arith.constant 32 : index
    %38 = vector.load %arg6[%c0_19, %c32] : memref<128x36xf32, #tpu.memory_space<vmem>>, vector<128x4xf32>
    tpu.vector_store %arg6[%c0_19, %c32], %37 {strides = array<i32>} : memref<128x36xf32, #tpu.memory_space<vmem>>, vector<128x4xf32>,
    %c0_20 = arith.constant 0 : index
    %c0_21 = arith.constant 0 : index
    %39 = vector.load %arg3[%c0_20, %c0_21] : memref<8x36xf32, #tpu.memory_space<vmem>>, vector<8x36xf32>
    %c0_22 = arith.constant 0 : index
    %c0_23 = arith.constant 0 : index
    %40 = vector.load %arg6[%c0_22, %c0_23] : memref<128x36xf32, #tpu.memory_space<vmem>>, vector<128x36xf32>
    %cst_24 = arith.constant dense<0.000000e+00> : vector<8x128xf32>
    %41 = tpu.matmul %39, %40, %cst_24 {dimension_numbers = #tpu.dot_dimension_numbers<[1], [1], [0], [0], [0, 0, 1, 0], [], []>} : vector<8x36xf32>, vector<128x36xf32>, vector<8x128xf32> -> vector<8x128xf32>
    %c0_25 = arith.constant 0 : index
    %c0_26 = arith.constant 0 : index
    %c0_27 = arith.constant 0 : index
    %42 = vector.load %arg4[%c0_25, %c0_26, %c0_27] : memref<1x8x128xf32, #tpu.memory_space<vmem>>, vector<1x8x128xf32>
    %43 = vector.shape_cast %42 : vector<1x8x128xf32> to vector<8x128xf32>
    %44 = vector.shape_cast %41 : vector<8x128xf32> to vector<1x8x128xf32>
    tpu.vector_store %arg4[%c0_25, %c0_26, %c0_27], %44 {strides = array<i32>} : memref<1x8x128xf32, #tpu.memory_space<vmem>>, vector<1x8x128xf32>,
    return
  }
  func.func @transform_0(%arg0: i32, %arg1: i32) -> (i32, i32, i32, i32) {
    %c0_i32 = arith.constant 0 : i32
    %c0_i32_0 = arith.constant 0 : i32
    %c0_i32_1 = arith.constant 0 : i32
    %c0_i32_2 = arith.constant 0 : i32
    return %arg0, %c0_i32, %c0_i32_0, %c0_i32_1 : i32, i32, i32, i32
  }
  func.func @transform_1(%arg0: i32, %arg1: i32) -> (i32, i32) {
    %c0_i32 = arith.constant 0 : i32
    %c0_i32_0 = arith.constant 0 : i32
    %c0_i32_1 = arith.constant 0 : i32
    return %c0_i32, %c0_i32_0 : i32, i32
  }
  func.func @transform_2(%arg0: i32, %arg1: i32) -> (i32, i32, i32) {
    %c0_i32 = arith.constant 0 : i32
    %c0_i32_0 = arith.constant 0 : i32
    return %arg0, %c0_i32, %arg1 : i32, i32, i32
  }
}

</mosaic_0001>

<llo_original>
// kernel: tpu_custom_call.1
$region0: #{tpu_custom_call.1}
  #allocation0 [shape = 'u32[]', space=smem, size = 0x4, offset = 0x4, fixed_abs, tag = 'smem constant byte address 0x4 - core index']
  #allocation1 [shape = 'u32[72,128]{1,0:T(1,128)}', space=vmem, size = 0x9000, scoped, tag = 'internal scratch']
  #allocation2 [shape = 'f32[18,18,4]{2,1,0:T(8,128)}', space=vmem, size = 0x36000, scoped, tag = 'scratch operand']
  #allocation3 [shape = 'f32[128,36]{1,0:T(8,128)}', space=vmem, size = 0x10000, scoped, tag = 'scratch operand']
  %s0 = inlined_call_operand.vmem [shape: f32[2,16,16,4], index: 0, kind: input, shape index: {}]
  %s1 = inlined_call_operand.vmem [shape: f32[8,36], index: 1, kind: input, shape index: {}]
  %s2 = inlined_call_operand.hbm [shape: f32[2,8,256], index: 2, kind: output, shape index: {}]
  %s3 = sld [smem:[#allocation0]]
  $region41: #{tpu_custom_call.1} parent=0
    _
  %s5 = ssub.s32 1, %s3
  %s6 = scalar_select 0, %s5, %s3
  $region1: #{tpu_custom_call.1} parent=0
    #allocation4 [shape = 'u8[8192]{0}', space=vmem, size = 0x2000, scoped, tag = 'output window, operand 0']
    #allocation5 [shape = 's32[2]{0}', space=sflag, size = 0x8, scoped, tag = 'scoped memory for tpu_custom_call.1']
    %7 = vsyncpa [#allocation5], 0
    %s8 = scalar_lea.sflag [#allocation5], 1
    %9 = vsyncpa %s8, 0
    loop: start=0, step=1, limit=6
    $region2: #{tpu_custom_call.1} parent=1 // loop_pre_header
      _
    $region3: #{tpu_custom_call.1} parent=1 // loop_header
      %s11 = sphi 0, %s15
      %p12 = scmp.ge.s32.totalorder %s11, 6
      %s18 = sphi 0, %s30
      %s19 = sphi 0, %s26
      %s20 = sphi 0, %s18
      %s21 = sphi 0, %s19
      %s22 = sphi 0, %s20
      %s23 = sphi 0, %s21
      %s33 = sphi 0, %s35
      %s36 = sphi 0, %s33
      %s37 = sphi 0, %s36
      %s53 = sphi 0, %s37
      %s57 = sphi 0, %s57
      %s59 = sphi 0, %s57
      %s60 = sphi 0, %s59
      %s74 = sphi 0, %s60
      %s82 = sphi 0, %s84
      %s85 = sphi 0, %s82
      %s86 = sphi 0, %s85
      %s102 = sphi 0, %s86
    $region4: #{tpu_custom_call.1} parent=1 // loop_header_branch
      %14 = sbr.rel (%p12) target = $region8
    $region5: #{tpu_custom_call.1} parent=1 // loop_body
      %s16 = ssub.s32 %s11, 1
      %s17 = ssub.s32 %s11, 2
      %s24 = sadd.s32 1, %s19
      %p25 = scmp.ge.s32.totalorder %s24, 2
      %s26 = scalar_select %p25, 0, %s24
      %s27 = sadd.s32 1, %s18
      %s28 = scalar_select %p25, %s27, %s18
      %p29 = scmp.ge.s32.totalorder %s28, 2
      %s30 = scalar_select %p29, 0, %s28
      %s31 = ssub.s32 %s18, %s30
      %p32 = scmp.eq.s32.totalorder %s31, 0
      %s34 = sadd.s32 %s33, 1
      %s35 = scalar_select %p32, %s33, %s34
      %p38 = pneg %p32
      %p39 = scmp.eq.s32.totalorder %s11, 3
      %p40 = por %p38, %p39
      %p41 = scmp.ne.s32.totalorder %s33, %s36
      %p42 = scmp.eq.s32.totalorder %s11, 0
      %p43 = por %p41, %p42
      %p44 = scmp.ne.s32.totalorder %s33, %s36
      %p45 = scmp.eq.s32.totalorder %s16, 3
      %p46 = por %p44, %p45
      %p47 = scmp.ne.s32.totalorder %s36, %s37
      %p48 = scmp.eq.s32.totalorder %s16, 0
      %p49 = por %p47, %p48
      %p50 = scmp.ne.s32.totalorder %s36, %s37
      %p51 = scmp.eq.s32.totalorder %s17, 3
      %p52 = por %p50, %p51
      %p54 = scmp.ne.s32.totalorder %s37, %s53
      %p55 = scmp.eq.s32.totalorder %s17, 0
      %p56 = por %p54, %p55
      %s58 = sadd.s32 %s57, 1
      %p61 = scmp.eq.s32.totalorder %s11, 3
      %p62 = scmp.ne.s32.totalorder %s57, %s59
      %p63 = scmp.eq.s32.totalorder %s11, 0
      %p64 = por %p62, %p63
      %p65 = scmp.ne.s32.totalorder %s57, %s59
      %p66 = scmp.eq.s32.totalorder %s16, 3
      %p67 = por %p65, %p66
      %p68 = scmp.ne.s32.totalorder %s59, %s60
      %p69 = scmp.eq.s32.totalorder %s16, 0
      %p70 = por %p68, %p69
      %p71 = scmp.ne.s32.totalorder %s59, %s60
      %p72 = scmp.eq.s32.totalorder %s17, 3
      %p73 = por %p71, %p72
      %p75 = scmp.ne.s32.totalorder %s60, %s74
      %p76 = scmp.eq.s32.totalorder %s17, 0
      %p77 = por %p75, %p76
      %s78 = ssub.s32 %s18, %s30
      %s79 = ssub.s32 %s19, %s26
      %s80 = sor.u32 %s78, %s79
      %p81 = scmp.eq.s32.totalorder %s80, 0
      %s83 = sadd.s32 %s82, 1
      %s84 = scalar_select %p81, %s82, %s83
      %p87 = pneg %p81
      %p88 = scmp.eq.s32.totalorder %s11, 3
      %p89 = por %p87, %p88
      %p90 = scmp.ne.s32.totalorder %s82, %s85
      %p91 = scmp.eq.s32.totalorder %s11, 0
      %p92 = por %p90, %p91
      %p93 = scmp.ne.s32.totalorder %s82, %s85
      %p94 = scmp.eq.s32.totalorder %s16, 3
      %p95 = por %p93, %p94
      %p96 = scmp.ne.s32.totalorder %s85, %s86
      %p97 = scmp.eq.s32.totalorder %s16, 0
      %p98 = por %p96, %p97
      %p99 = scmp.ne.s32.totalorder %s85, %s86
      %p100 = scmp.eq.s32.totalorder %s17, 3
      %p101 = por %p99, %p100
      %p103 = scmp.ne.s32.totalorder %s86, %s102
      %p104 = scmp.eq.s32.totalorder %s17, 0
      %p105 = por %p103, %p104
      %p106 = scmp.le.s32.totalorder 1, %s11
      %p107 = scmp.lt.s32.totalorder %s11, 5
      %p108 = pnand %p106, %p107
      %p109 = pneg %p108
      // Predicated region
      $region9: #{tpu_custom_call.1} parent=5 // pred_check
        _
      $region10: #{tpu_custom_call.1} parent=5 // pred_check_branch
        %111 = sbr.rel (%p108) target = $region12
      $region11: #{tpu_custom_call.1} parent=5 // pred_region
        %s112 = ssub.s32 %s11, 1
        // Predicated region
        $region13: #{tpu_custom_call.1} parent=11 // pred_check
          %p113 = pneg %p70
        $region14: #{tpu_custom_call.1} parent=11 // pred_check_branch
          %115 = sbr.rel (%p113) target = $region16
        $region15: #{tpu_custom_call.1} parent=11 // pred_region
          _
        $region16: #{tpu_custom_call.1} parent=11 // pred_fallthru
          _
      $region12: #{tpu_custom_call.1} parent=5 // pred_fallthru
        _
      %p116 = scmp.lt.s32.totalorder %s11, 4
      // Predicated region
      $region17: #{tpu_custom_call.1} parent=5 // pred_check
        %p117 = pneg %p116
      $region18: #{tpu_custom_call.1} parent=5 // pred_check_branch
        %119 = sbr.rel (%p117) target = $region20
      $region19: #{tpu_custom_call.1} parent=5 // pred_region
        // Predicated region
        $region21: #{tpu_custom_call.1} parent=19 // pred_check
          %p120 = pneg %p43
        $region22: #{tpu_custom_call.1} parent=19 // pred_check_branch
          %122 = sbr.rel (%p120) target = $region24
        $region23: #{tpu_custom_call.1} parent=19 // pred_region
          %p123 = scmp.lt.s32.totalorder %s18, 1
          %s124 = scalar_select %p123, %s18, 1
          %s125 = smul.addr %s124, 32
          %s126 = smul.addr %s125, 8
          %s127 = scalar_lea.vmem %s0, %s126
        $region24: #{tpu_custom_call.1} parent=19 // pred_fallthru
          _
      $region20: #{tpu_custom_call.1} parent=5 // pred_fallthru
        _
      %p128 = scmp.le.s32.totalorder 1, %s11
      %p129 = scmp.lt.s32.totalorder %s11, 5
      %p130 = pnand %p128, %p129
      %p131 = pneg %p130
      // Predicated region
      $region25: #{tpu_custom_call.1} parent=5 // pred_check
        _
      $region26: #{tpu_custom_call.1} parent=5 // pred_check_branch
        %133 = sbr.rel (%p130) target = $region28
      $region27: #{tpu_custom_call.1} parent=5 // pred_region
        %s134 = ssub.s32 %s11, 1
        %p135 = scmp.lt.s32.totalorder %s20, 1
        %s136 = scalar_select %p135, %s20, 1
        %s137 = smul.addr %s136, 32
        %s138 = smul.addr %s137, 8
        %s139 = scalar_lea.vmem %s0, %s138
        %p140 = pneg %p49
        %p141 = pneg %p46
        %p142 = pneg %p70
        %p143 = pneg %p67
        %p144 = pneg %p98
        %p145 = pneg %p95
        %s146 = sand.u32 %s85, 1
        %s147 = scalar_lea.sflag [#allocation5], %s146
        %s148 = sand.u32 %s85, 1
        %s149 = smul.addr %s148, 8
        %s150 = scalar_lea.vmem [#allocation4], %s149
        %p151 = scmp.lt.s32.totalorder %s20, 1
        %s152 = scalar_select %p151, %s20, 1
        %s153 = smul.addr %s152, 32
        %s154 = smul.addr %s153, 8
        %s155 = scalar_lea.vmem %s0, %s154
        %vm156 = vcmask 31744
        %157 = vst.msk [vmem:[#allocation2] sm:$0xff] %vm156, 0.0
        %158 = vst.msk [vmem:[#allocation2 + $0x8] sm:$0xff] %vm156, 0.0
        %vm159 = vcmask 25600
        %160 = vst.msk [vmem:[#allocation2 + $0x10] sm:$0x3] %vm159, 0.0
        %161 = vst.msk [vmem:[#allocation2 + $0x18] sm:$0xff] %vm156, 0.0
        %162 = vst.msk [vmem:[#allocation2 + $0x20] sm:$0xff] %vm156, 0.0
        %163 = vst.msk [vmem:[#allocation2 + $0x28] sm:$0x3] %vm159, 0.0
        %164 = vst.msk [vmem:[#allocation2 + $0x30] sm:$0xff] %vm156, 0.0
        %165 = vst.msk [vmem:[#allocation2 + $0x38] sm:$0xff] %vm156, 0.0
        %166 = vst.msk [vmem:[#allocation2 + $0x40] sm:$0x3] %vm159, 0.0
        %167 = vst.msk [vmem:[#allocation2 + $0x48] sm:$0xff] %vm156, 0.0
        %168 = vst.msk [vmem:[#allocation2 + $0x50] sm:$0xff] %vm156, 0.0
        %169 = vst.msk [vmem:[#allocation2 + $0x58] sm:$0x3] %vm159, 0.0
        %170 = vst.msk [vmem:[#allocation2 + $0x60] sm:$0xff] %vm156, 0.0
        %171 = vst.msk [vmem:[#allocation2 + $0x68] sm:$0xff] %vm156, 0.0
        %172 = vst.msk [vmem:[#allocation2 + $0x70] sm:$0x3] %vm159, 0.0
        %173 = vst.msk [vmem:[#allocation2 + $0x78] sm:$0xff] %vm156, 0.0
        %174 = vst.msk [vmem:[#allocation2 + $0x80] sm:$0xff] %vm156, 0.0
        %175 = vst.msk [vmem:[#allocation2 + $0x88] sm:$0x3] %vm159, 0.0
        %176 = vst.msk [vmem:[#allocation2 + $0x90] sm:$0xff] %vm156, 0.0
        %177 = vst.msk [vmem:[#allocation2 + $0x98] sm:$0xff] %vm156, 0.0
        %178 = vst.msk [vmem:[#allocation2 + $0xa0] sm:$0x3] %vm159, 0.0
        %179 = vst.msk [vmem:[#allocation2 + $0xa8] sm:$0xff] %vm156, 0.0
        %180 = vst.msk [vmem:[#allocation2 + $0xb0] sm:$0xff] %vm156, 0.0
        %181 = vst.msk [vmem:[#allocation2 + $0xb8] sm:$0x3] %vm159, 0.0
        %182 = vst.msk [vmem:[#allocation2 + $0xc0] sm:$0xff] %vm156, 0.0
        %183 = vst.msk [vmem:[#allocation2 + $0xc8] sm:$0xff] %vm156, 0.0
        %184 = vst.msk [vmem:[#allocation2 + $0xd0] sm:$0x3] %vm159, 0.0
        %185 = vst.msk [vmem:[#allocation2 + $0xd8] sm:$0xff] %vm156, 0.0
        %186 = vst.msk [vmem:[#allocation2 + $0xe0] sm:$0xff] %vm156, 0.0
        %187 = vst.msk [vmem:[#allocation2 + $0xe8] sm:$0x3] %vm159, 0.0
        %188 = vst.msk [vmem:[#allocation2 + $0xf0] sm:$0xff] %vm156, 0.0
        %189 = vst.msk [vmem:[#allocation2 + $0xf8] sm:$0xff] %vm156, 0.0
        %190 = vst.msk [vmem:[#allocation2 + $0x100] sm:$0x3] %vm159, 0.0
        %191 = vst.msk [vmem:[#allocation2 + $0x108] sm:$0xff] %vm156, 0.0
        %192 = vst.msk [vmem:[#allocation2 + $0x110] sm:$0xff] %vm156, 0.0
        %193 = vst.msk [vmem:[#allocation2 + $0x118] sm:$0x3] %vm159, 0.0
        %194 = vst.msk [vmem:[#allocation2 + $0x120] sm:$0xff] %vm156, 0.0
        %195 = vst.msk [vmem:[#allocation2 + $0x128] sm:$0xff] %vm156, 0.0
        %196 = vst.msk [vmem:[#allocation2 + $0x130] sm:$0x3] %vm159, 0.0
        %197 = vst.msk [vmem:[#allocation2 + $0x138] sm:$0xff] %vm156, 0.0
        %198 = vst.msk [vmem:[#allocation2 + $0x140] sm:$0xff] %vm156, 0.0
        %199 = vst.msk [vmem:[#allocation2 + $0x148] sm:$0x3] %vm159, 0.0
        %200 = vst.msk [vmem:[#allocation2 + $0x150] sm:$0xff] %vm156, 0.0
        %201 = vst.msk [vmem:[#allocation2 + $0x158] sm:$0xff] %vm156, 0.0
        %202 = vst.msk [vmem:[#allocation2 + $0x160] sm:$0x3] %vm159, 0.0
        %203 = vst.msk [vmem:[#allocation2 + $0x168] sm:$0xff] %vm156, 0.0
        %204 = vst.msk [vmem:[#allocation2 + $0x170] sm:$0xff] %vm156, 0.0
        %205 = vst.msk [vmem:[#allocation2 + $0x178] sm:$0x3] %vm159, 0.0
        %206 = vst.msk [vmem:[#allocation2 + $0x180] sm:$0xff] %vm156, 0.0
        %207 = vst.msk [vmem:[#allocation2 + $0x188] sm:$0xff] %vm156, 0.0
        %208 = vst.msk [vmem:[#allocation2 + $0x190] sm:$0x3] %vm159, 0.0
        %209 = vst.msk [vmem:[#allocation2 + $0x198] sm:$0xff] %vm156, 0.0
        %210 = vst.msk [vmem:[#allocation2 + $0x1a0] sm:$0xff] %vm156, 0.0
        %211 = vst.msk [vmem:[#allocation2 + $0x1a8] sm:$0x3] %vm159, 0.0
        %v212 = vld [vmem:[%s155] sm:$0xff]
        %v213 = vld [vmem:[%s155 + $0x8] sm:$0xff]
        %v214 = vld [vmem:[%s155 + $0x10] sm:$0xff]
        %v215 = vld [vmem:[%s155 + $0x18] sm:$0xff]
        %v216 = vld [vmem:[%s155 + $0x20] sm:$0xff]
        %v217 = vld [vmem:[%s155 + $0x28] sm:$0xff]
        %v218 = vld [vmem:[%s155 + $0x30] sm:$0xff]
        %v219 = vld [vmem:[%s155 + $0x38] sm:$0xff]
        %v220 = vld [vmem:[%s155 + $0x40] sm:$0xff]
        %v221 = vld [vmem:[%s155 + $0x48] sm:$0xff]
        %v222 = vld [vmem:[%s155 + $0x50] sm:$0xff]
        %v223 = vld [vmem:[%s155 + $0x58] sm:$0xff]
        %v224 = vld [vmem:[%s155 + $0x60] sm:$0xff]
        %v225 = vld [vmem:[%s155 + $0x68] sm:$0xff]
        %v226 = vld [vmem:[%s155 + $0x70] sm:$0xff]
        %v227 = vld [vmem:[%s155 + $0x78] sm:$0xff]
        %v228 = vld [vmem:[%s155 + $0x80] sm:$0xff]
        %v229 = vld [vmem:[%s155 + $0x88] sm:$0xff]
        %v230 = vld [vmem:[%s155 + $0x90] sm:$0xff]
        %v231 = vld [vmem:[%s155 + $0x98] sm:$0xff]
        %v232 = vld [vmem:[%s155 + $0xa0] sm:$0xff]
        %v233 = vld [vmem:[%s155 + $0xa8] sm:$0xff]
        %v234 = vld [vmem:[%s155 + $0xb0] sm:$0xff]
        %v235 = vld [vmem:[%s155 + $0xb8] sm:$0xff]
        %v236 = vld [vmem:[%s155 + $0xc0] sm:$0xff]
        %v237 = vld [vmem:[%s155 + $0xc8] sm:$0xff]
        %v238 = vld [vmem:[%s155 + $0xd0] sm:$0xff]
        %v239 = vld [vmem:[%s155 + $0xd8] sm:$0xff]
        %v240 = vld [vmem:[%s155 + $0xe0] sm:$0xff]
        %v241 = vld [vmem:[%s155 + $0xe8] sm:$0xff]
        %v242 = vld [vmem:[%s155 + $0xf0] sm:$0xff]
        %v243 = vld [vmem:[%s155 + $0xf8] sm:$0xff]
        %s244 = scalar_lea.vmem [#allocation2], 24
        %245 = vst.msk [vmem:[%s244 + $0x1] sm:$0xff] %vm156, %v212
        %246 = vst.msk [vmem:[%s244 + $0x9] sm:$0xff] %vm156, %v213
        %247 = vst.msk [vmem:[%s244 + $0x19] sm:$0xff] %vm156, %v214
        %248 = vst.msk [vmem:[%s244 + $0x21] sm:$0xff] %vm156, %v215
        %249 = vst.msk [vmem:[%s244 + $0x31] sm:$0xff] %vm156, %v216
        %250 = vst.msk [vmem:[%s244 + $0x39] sm:$0xff] %vm156, %v217
        %251 = vst.msk [vmem:[%s244 + $0x49] sm:$0xff] %vm156, %v218
        %252 = vst.msk [vmem:[%s244 + $0x51] sm:$0xff] %vm156, %v219
        %253 = vst.msk [vmem:[%s244 + $0x61] sm:$0xff] %vm156, %v220
        %254 = vst.msk [vmem:[%s244 + $0x69] sm:$0xff] %vm156, %v221
        %255 = vst.msk [vmem:[%s244 + $0x79] sm:$0xff] %vm156, %v222
        %256 = vst.msk [vmem:[%s244 + $0x81] sm:$0xff] %vm156, %v223
        %257 = vst.msk [vmem:[%s244 + $0x91] sm:$0xff] %vm156, %v224
        %258 = vst.msk [vmem:[%s244 + $0x99] sm:$0xff] %vm156, %v225
        %259 = vst.msk [vmem:[%s244 + $0xa9] sm:$0xff] %vm156, %v226
        %260 = vst.msk [vmem:[%s244 + $0xb1] sm:$0xff] %vm156, %v227
        %261 = vst.msk [vmem:[%s244 + $0xc1] sm:$0xff] %vm156, %v228
        %262 = vst.msk [vmem:[%s244 + $0xc9] sm:$0xff] %vm156, %v229
        %263 = vst.msk [vmem:[%s244 + $0xd9] sm:$0xff] %vm156, %v230
        %264 = vst.msk [vmem:[%s244 + $0xe1] sm:$0xff] %vm156, %v231
        %265 = vst.msk [vmem:[%s244 + $0xf1] sm:$0xff] %vm156, %v232
        %266 = vst.msk [vmem:[%s244 + $0xf9] sm:$0xff] %vm156, %v233
        %267 = vst.msk [vmem:[%s244 + $0x109] sm:$0xff] %vm156, %v234
        %268 = vst.msk [vmem:[%s244 + $0x111] sm:$0xff] %vm156, %v235
        %269 = vst.msk [vmem:[%s244 + $0x121] sm:$0xff] %vm156, %v236
        %270 = vst.msk [vmem:[%s244 + $0x129] sm:$0xff] %vm156, %v237
        %271 = vst.msk [vmem:[%s244 + $0x139] sm:$0xff] %vm156, %v238
        %272 = vst.msk [vmem:[%s244 + $0x141] sm:$0xff] %vm156, %v239
        %273 = vst.msk [vmem:[%s244 + $0x151] sm:$0xff] %vm156, %v240
        %274 = vst.msk [vmem:[%s244 + $0x159] sm:$0xff] %vm156, %v241
        %275 = vst.msk [vmem:[%s244 + $0x169] sm:$0xff] %vm156, %v242
        %276 = vst.msk [vmem:[%s244 + $0x171] sm:$0xff] %vm156, %v243
        %s277 = smul.u32 %s21, 8
        %s278 = smul.u32 %s277, 24
        %s279 = scalar_lea.vmem [#allocation2], %s278
        %v280 = vld [vmem:[%s279] sm:$0xff]
        %v281 = vld [vmem:[%s279 + $0x8] sm:$0xff]
        %v282 = vld [vmem:[%s279 + $0x10] sm:$0x3]
        %v283 = vld [vmem:[%s279 + $0x18] sm:$0xff]
        %v284 = vld [vmem:[%s279 + $0x20] sm:$0xff]
        %v285 = vld [vmem:[%s279 + $0x28] sm:$0x3]
        %v286 = vld [vmem:[%s279 + $0x30] sm:$0xff]
        %v287 = vld [vmem:[%s279 + $0x38] sm:$0xff]
        %v288 = vld [vmem:[%s279 + $0x40] sm:$0x3]
        %v289 = vld [vmem:[%s279 + $0x48] sm:$0xff]
        %v290 = vld [vmem:[%s279 + $0x50] sm:$0xff]
        %v291 = vld [vmem:[%s279 + $0x58] sm:$0x3]
        %v292 = vld [vmem:[%s279 + $0x60] sm:$0xff]
        %v293 = vld [vmem:[%s279 + $0x68] sm:$0xff]
        %v294 = vld [vmem:[%s279 + $0x70] sm:$0x3]
        %v295 = vld [vmem:[%s279 + $0x78] sm:$0xff]
        %v296 = vld [vmem:[%s279 + $0x80] sm:$0xff]
        %v297 = vld [vmem:[%s279 + $0x88] sm:$0x3]
        %v298 = vld [vmem:[%s279 + $0x90] sm:$0xff]
        %v299 = vld [vmem:[%s279 + $0x98] sm:$0xff]
        %v300 = vld [vmem:[%s279 + $0xa0] sm:$0x3]
        %v301 = vld [vmem:[%s279 + $0xa8] sm:$0xff]
        %v302 = vld [vmem:[%s279 + $0xb0] sm:$0xff]
        %v303 = vld [vmem:[%s279 + $0xb8] sm:$0x3]
        %v304 = vld [vmem:[%s279 + $0xc0] sm:$0xff]
        %v305 = vld [vmem:[%s279 + $0xc8] sm:$0xff]
        %v306 = vld [vmem:[%s279 + $0xd0] sm:$0x3]
        %v307 = vld [vmem:[%s279 + $0xd8] sm:$0xff]
        %v308 = vld [vmem:[%s279 + $0xe0] sm:$0xff]
        %v309 = vld [vmem:[%s279 + $0xe8] sm:$0x3]
        %310 = vst.msk [vmem:[#allocation3] sm:$0xff] %vm156, %v280
        %311 = vst.msk [vmem:[#allocation3 + $0x8] sm:$0xff] %vm156, %v281
        %312 = vst.msk [vmem:[#allocation3 + $0x10] sm:$0xff] %vm156, %v283
        %313 = vst.msk [vmem:[#allocation3 + $0x18] sm:$0xff] %vm156, %v284
        %314 = vst.msk [vmem:[#allocation3 + $0x20] sm:$0xff] %vm156, %v286
        %315 = vst.msk [vmem:[#allocation3 + $0x28] sm:$0xff] %vm156, %v287
        %316 = vst.msk [vmem:[#allocation3 + $0x30] sm:$0xff] %vm156, %v289
        %317 = vst.msk [vmem:[#allocation3 + $0x38] sm:$0xff] %vm156, %v290
        %318 = vst.msk [vmem:[#allocation3 + $0x40] sm:$0xff] %vm156, %v292
        %319 = vst.msk [vmem:[#allocation3 + $0x48] sm:$0xff] %vm156, %v293
        %320 = vst.msk [vmem:[#allocation3 + $0x50] sm:$0xff] %vm156, %v295
        %321 = vst.msk [vmem:[#allocation3 + $0x58] sm:$0xff] %vm156, %v296
        %322 = vst.msk [vmem:[#allocation3 + $0x60] sm:$0xff] %vm156, %v298
        %323 = vst.msk [vmem:[#allocation3 + $0x68] sm:$0xff] %vm156, %v299
        %324 = vst.msk [vmem:[#allocation3 + $0x70] sm:$0xff] %vm156, %v301
        %325 = vst.msk [vmem:[#allocation3 + $0x78] sm:$0xff] %vm156, %v302
        %342 = vrot.lane.b32.xlu0 %v283, 12
        %v343 = vpop.permute.xlu0 %342
        %344 = vrot.lane.b32.xlu0 %v284, 12
        %v345 = vpop.permute.xlu0 %344
        %346 = vrot.lane.b32.xlu0 %v286, 12
        %v347 = vpop.permute.xlu0 %346
        %348 = vrot.lane.b32.xlu0 %v287, 12
        %v349 = vpop.permute.xlu0 %348
        %350 = vrot.lane.b32.xlu0 %v289, 12
        %v351 = vpop.permute.xlu0 %350
        %352 = vrot.lane.b32.xlu0 %v290, 12
        %v353 = vpop.permute.xlu0 %352
        %354 = vrot.lane.b32.xlu0 %v292, 12
        %v355 = vpop.permute.xlu0 %354
        %356 = vrot.lane.b32.xlu0 %v293, 12
        %v357 = vpop.permute.xlu0 %356
        %358 = vrot.lane.b32.xlu0 %v295, 12
        %v359 = vpop.permute.xlu0 %358
        %360 = vrot.lane.b32.xlu0 %v296, 12
        %v361 = vpop.permute.xlu0 %360
        %362 = vrot.lane.b32.xlu0 %v298, 12
        %v363 = vpop.permute.xlu0 %362
        %364 = vrot.lane.b32.xlu0 %v299, 12
        %v365 = vpop.permute.xlu0 %364
        %366 = vrot.lane.b32.xlu0 %v301, 12
        %v367 = vpop.permute.xlu0 %366
        %368 = vrot.lane.b32.xlu0 %v302, 12
        %v369 = vpop.permute.xlu0 %368
        %370 = vrot.lane.b32.xlu0 %v304, 12
        %v371 = vpop.permute.xlu0 %370
        %372 = vrot.lane.b32.xlu0 %v305, 12
        %v373 = vpop.permute.xlu0 %372
        %vm390 = vcmask 130144
        %391 = vst.msk [vmem:[#allocation3] sm:$0xff] %vm390, %v343
        %392 = vst.msk [vmem:[#allocation3 + $0x8] sm:$0xff] %vm390, %v345
        %393 = vst.msk [vmem:[#allocation3 + $0x10] sm:$0xff] %vm390, %v347
        %394 = vst.msk [vmem:[#allocation3 + $0x18] sm:$0xff] %vm390, %v349
        %395 = vst.msk [vmem:[#allocation3 + $0x20] sm:$0xff] %vm390, %v351
        %396 = vst.msk [vmem:[#allocation3 + $0x28] sm:$0xff] %vm390, %v353
        %397 = vst.msk [vmem:[#allocation3 + $0x30] sm:$0xff] %vm390, %v355
        %398 = vst.msk [vmem:[#allocation3 + $0x38] sm:$0xff] %vm390, %v357
        %399 = vst.msk [vmem:[#allocation3 + $0x40] sm:$0xff] %vm390, %v359
        %400 = vst.msk [vmem:[#allocation3 + $0x48] sm:$0xff] %vm390, %v361
        %401 = vst.msk [vmem:[#allocation3 + $0x50] sm:$0xff] %vm390, %v363
        %402 = vst.msk [vmem:[#allocation3 + $0x58] sm:$0xff] %vm390, %v365
        %403 = vst.msk [vmem:[#allocation3 + $0x60] sm:$0xff] %vm390, %v367
        %404 = vst.msk [vmem:[#allocation3 + $0x68] sm:$0xff] %vm390, %v369
        %405 = vst.msk [vmem:[#allocation3 + $0x70] sm:$0xff] %vm390, %v371
        %406 = vst.msk [vmem:[#allocation3 + $0x78] sm:$0xff] %vm390, %v373
        %409 = vrot.lane.b32.xlu0 %v286, 24
        %v410 = vpop.permute.xlu0 %409
        %411 = vrot.lane.b32.xlu0 %v287, 24
        %v412 = vpop.permute.xlu0 %411
        %413 = vrot.lane.b32.xlu0 %v289, 24
        %v414 = vpop.permute.xlu0 %413
        %415 = vrot.lane.b32.xlu0 %v290, 24
        %v416 = vpop.permute.xlu0 %415
        %417 = vrot.lane.b32.xlu0 %v292, 24
        %v418 = vpop.permute.xlu0 %417
        %419 = vrot.lane.b32.xlu0 %v293, 24
        %v420 = vpop.permute.xlu0 %419
        %421 = vrot.lane.b32.xlu0 %v295, 24
        %v422 = vpop.permute.xlu0 %421
        %423 = vrot.lane.b32.xlu0 %v296, 24
        %v424 = vpop.permute.xlu0 %423
        %425 = vrot.lane.b32.xlu0 %v298, 24
        %v426 = vpop.permute.xlu0 %425
        %427 = vrot.lane.b32.xlu0 %v299, 24
        %v428 = vpop.permute.xlu0 %427
        %429 = vrot.lane.b32.xlu0 %v301, 24
        %v430 = vpop.permute.xlu0 %429
        %431 = vrot.lane.b32.xlu0 %v302, 24
        %v432 = vpop.permute.xlu0 %431
        %433 = vrot.lane.b32.xlu0 %v304, 24
        %v434 = vpop.permute.xlu0 %433
        %435 = vrot.lane.b32.xlu0 %v305, 24
        %v436 = vpop.permute.xlu0 %435
        %437 = vrot.lane.b32.xlu0 %v307, 24
        %v438 = vpop.permute.xlu0 %437
        %439 = vrot.lane.b32.xlu0 %v308, 24
        %v440 = vpop.permute.xlu0 %439
        %vm457 = vcmask 228544
        %458 = vst.msk [vmem:[#allocation3] sm:$0xff] %vm457, %v410
        %459 = vst.msk [vmem:[#allocation3 + $0x8] sm:$0xff] %vm457, %v412
        %460 = vst.msk [vmem:[#allocation3 + $0x10] sm:$0xff] %vm457, %v414
        %461 = vst.msk [vmem:[#allocation3 + $0x18] sm:$0xff] %vm457, %v416
        %462 = vst.msk [vmem:[#allocation3 + $0x20] sm:$0xff] %vm457, %v418
        %463 = vst.msk [vmem:[#allocation3 + $0x28] sm:$0xff] %vm457, %v420
        %464 = vst.msk [vmem:[#allocation3 + $0x30] sm:$0xff] %vm457, %v422
        %465 = vst.msk [vmem:[#allocation3 + $0x38] sm:$0xff] %vm457, %v424
        %466 = vst.msk [vmem:[#allocation3 + $0x40] sm:$0xff] %vm457, %v426
        %467 = vst.msk [vmem:[#allocation3 + $0x48] sm:$0xff] %vm457, %v428
        %468 = vst.msk [vmem:[#allocation3 + $0x50] sm:$0xff] %vm457, %v430
        %469 = vst.msk [vmem:[#allocation3 + $0x58] sm:$0xff] %vm457, %v432
        %470 = vst.msk [vmem:[#allocation3 + $0x60] sm:$0xff] %vm457, %v434
        %471 = vst.msk [vmem:[#allocation3 + $0x68] sm:$0xff] %vm457, %v436
        %472 = vst.msk [vmem:[#allocation3 + $0x70] sm:$0xff] %vm457, %v438
        %473 = vst.msk [vmem:[#allocation3 + $0x78] sm:$0xff] %vm457, %v440
        %vm484 = vcmask 1046528
        %v485 = vrot.slane %v280, 1
        %v486 = vrot.slane %v281, 1
        %v487 = vsel %vm484, %v485, %v486
        %v488 = vrot.slane %v282, 1
        %v489 = vsel %vm484, %v486, %v488
        %v490 = vrot.slane %v283, 1
        %v491 = vrot.slane %v284, 1
        %v492 = vsel %vm484, %v490, %v491
        %v493 = vrot.slane %v285, 1
        %v494 = vsel %vm484, %v491, %v493
        %v495 = vrot.slane %v286, 1
        %v496 = vrot.slane %v287, 1
        %v497 = vsel %vm484, %v495, %v496
        %v498 = vrot.slane %v288, 1
        %v499 = vsel %vm484, %v496, %v498
        %v500 = vrot.slane %v289, 1
        %v501 = vrot.slane %v290, 1
        %v502 = vsel %vm484, %v500, %v501
        %v503 = vrot.slane %v291, 1
        %v504 = vsel %vm484, %v501, %v503
        %v505 = vrot.slane %v292, 1
        %v506 = vrot.slane %v293, 1
        %v507 = vsel %vm484, %v505, %v506
        %v508 = vrot.slane %v294, 1
        %v509 = vsel %vm484, %v506, %v508
        %v510 = vrot.slane %v295, 1
        %v511 = vrot.slane %v296, 1
        %v512 = vsel %vm484, %v510, %v511
        %v513 = vrot.slane %v297, 1
        %v514 = vsel %vm484, %v511, %v513
        %v515 = vrot.slane %v298, 1
        %v516 = vrot.slane %v299, 1
        %v517 = vsel %vm484, %v515, %v516
        %v518 = vrot.slane %v300, 1
        %v519 = vsel %vm484, %v516, %v518
        %v520 = vrot.slane %v301, 1
        %v521 = vrot.slane %v302, 1
        %v522 = vsel %vm484, %v520, %v521
        %v523 = vrot.slane %v303, 1
        %v524 = vsel %vm484, %v521, %v523
        %525 = vrot.lane.b32.xlu0 %v487, 4
        %v526 = vpop.permute.xlu0 %525
        %527 = vrot.lane.b32.xlu0 %v489, 4
        %v528 = vpop.permute.xlu0 %527
        %529 = vrot.lane.b32.xlu0 %v492, 4
        %v530 = vpop.permute.xlu0 %529
        %531 = vrot.lane.b32.xlu0 %v494, 4
        %v532 = vpop.permute.xlu0 %531
        %533 = vrot.lane.b32.xlu0 %v497, 4
        %v534 = vpop.permute.xlu0 %533
        %535 = vrot.lane.b32.xlu0 %v499, 4
        %v536 = vpop.permute.xlu0 %535
        %537 = vrot.lane.b32.xlu0 %v502, 4
        %v538 = vpop.permute.xlu0 %537
        %539 = vrot.lane.b32.xlu0 %v504, 4
        %v540 = vpop.permute.xlu0 %539
        %541 = vrot.lane.b32.xlu0 %v507, 4
        %v542 = vpop.permute.xlu0 %541
        %543 = vrot.lane.b32.xlu0 %v509, 4
        %v544 = vpop.permute.xlu0 %543
        %545 = vrot.lane.b32.xlu0 %v512, 4
        %v546 = vpop.permute.xlu0 %545
        %547 = vrot.lane.b32.xlu0 %v514, 4
        %v548 = vpop.permute.xlu0 %547
        %549 = vrot.lane.b32.xlu0 %v517, 4
        %v550 = vpop.permute.xlu0 %549
        %551 = vrot.lane.b32.xlu0 %v519, 4
        %v552 = vpop.permute.xlu0 %551
        %553 = vrot.lane.b32.xlu0 %v522, 4
        %v554 = vpop.permute.xlu0 %553
        %555 = vrot.lane.b32.xlu0 %v524, 4
        %v556 = vpop.permute.xlu0 %555
        %vm573 = vcmask 64544
        %574 = vst.msk [vmem:[#allocation3] sm:$0xff] %vm573, %v526
        %575 = vst.msk [vmem:[#allocation3 + $0x8] sm:$0xff] %vm573, %v528
        %576 = vst.msk [vmem:[#allocation3 + $0x10] sm:$0xff] %vm573, %v530
        %577 = vst.msk [vmem:[#allocation3 + $0x18] sm:$0xff] %vm573, %v532
        %578 = vst.msk [vmem:[#allocation3 + $0x20] sm:$0xff] %vm573, %v534
        %579 = vst.msk [vmem:[#allocation3 + $0x28] sm:$0xff] %vm573, %v536
        %580 = vst.msk [vmem:[#allocation3 + $0x30] sm:$0xff] %vm573, %v538
        %581 = vst.msk [vmem:[#allocation3 + $0x38] sm:$0xff] %vm573, %v540
        %582 = vst.msk [vmem:[#allocation3 + $0x40] sm:$0xff] %vm573, %v542
        %583 = vst.msk [vmem:[#allocation3 + $0x48] sm:$0xff] %vm573, %v544
        %584 = vst.msk [vmem:[#allocation3 + $0x50] sm:$0xff] %vm573, %v546
        %585 = vst.msk [vmem:[#allocation3 + $0x58] sm:$0xff] %vm573, %v548
        %586 = vst.msk [vmem:[#allocation3 + $0x60] sm:$0xff] %vm573, %v550
        %587 = vst.msk [vmem:[#allocation3 + $0x68] sm:$0xff] %vm573, %v552
        %588 = vst.msk [vmem:[#allocation3 + $0x70] sm:$0xff] %vm573, %v554
        %589 = vst.msk [vmem:[#allocation3 + $0x78] sm:$0xff] %vm573, %v556
        %v591 = vrot.slane %v304, 1
        %v592 = vrot.slane %v305, 1
        %v593 = vsel %vm484, %v591, %v592
        %v594 = vrot.slane %v306, 1
        %v595 = vsel %vm484, %v592, %v594
        %596 = vrot.lane.b32.xlu0 %v492, 16
        %v597 = vpop.permute.xlu0 %596
        %598 = vrot.lane.b32.xlu0 %v494, 16
        %v599 = vpop.permute.xlu0 %598
        %600 = vrot.lane.b32.xlu0 %v497, 16
        %v601 = vpop.permute.xlu0 %600
        %602 = vrot.lane.b32.xlu0 %v499, 16
        %v603 = vpop.permute.xlu0 %602
        %604 = vrot.lane.b32.xlu0 %v502, 16
        %v605 = vpop.permute.xlu0 %604
        %606 = vrot.lane.b32.xlu0 %v504, 16
        %v607 = vpop.permute.xlu0 %606
        %608 = vrot.lane.b32.xlu0 %v507, 16
        %v609 = vpop.permute.xlu0 %608
        %610 = vrot.lane.b32.xlu0 %v509, 16
        %v611 = vpop.permute.xlu0 %610
        %612 = vrot.lane.b32.xlu0 %v512, 16
        %v613 = vpop.permute.xlu0 %612
        %614 = vrot.lane.b32.xlu0 %v514, 16
        %v615 = vpop.permute.xlu0 %614
        %616 = vrot.lane.b32.xlu0 %v517, 16
        %v617 = vpop.permute.xlu0 %616
        %618 = vrot.lane.b32.xlu0 %v519, 16
        %v619 = vpop.permute.xlu0 %618
        %620 = vrot.lane.b32.xlu0 %v522, 16
        %v621 = vpop.permute.xlu0 %620
        %622 = vrot.lane.b32.xlu0 %v524, 16
        %v623 = vpop.permute.xlu0 %622
        %624 = vrot.lane.b32.xlu0 %v593, 16
        %v625 = vpop.permute.xlu0 %624
        %626 = vrot.lane.b32.xlu0 %v595, 16
        %v627 = vpop.permute.xlu0 %626
        %vm644 = vcmask 162944
        %645 = vst.msk [vmem:[#allocation3] sm:$0xff] %vm644, %v597
        %646 = vst.msk [vmem:[#allocation3 + $0x8] sm:$0xff] %vm644, %v599
        %647 = vst.msk [vmem:[#allocation3 + $0x10] sm:$0xff] %vm644, %v601
        %648 = vst.msk [vmem:[#allocation3 + $0x18] sm:$0xff] %vm644, %v603
        %649 = vst.msk [vmem:[#allocation3 + $0x20] sm:$0xff] %vm644, %v605
        %650 = vst.msk [vmem:[#allocation3 + $0x28] sm:$0xff] %vm644, %v607
        %651 = vst.msk [vmem:[#allocation3 + $0x30] sm:$0xff] %vm644, %v609
        %652 = vst.msk [vmem:[#allocation3 + $0x38] sm:$0xff] %vm644, %v611
        %653 = vst.msk [vmem:[#allocation3 + $0x40] sm:$0xff] %vm644, %v613
        %654 = vst.msk [vmem:[#allocation3 + $0x48] sm:$0xff] %vm644, %v615
        %655 = vst.msk [vmem:[#allocation3 + $0x50] sm:$0xff] %vm644, %v617
        %656 = vst.msk [vmem:[#allocation3 + $0x58] sm:$0xff] %vm644, %v619
        %657 = vst.msk [vmem:[#allocation3 + $0x60] sm:$0xff] %vm644, %v621
        %658 = vst.msk [vmem:[#allocation3 + $0x68] sm:$0xff] %vm644, %v623
        %659 = vst.msk [vmem:[#allocation3 + $0x70] sm:$0xff] %vm644, %v625
        %660 = vst.msk [vmem:[#allocation3 + $0x78] sm:$0xff] %vm644, %v627
        %v662 = vrot.slane %v307, 1
        %v663 = vrot.slane %v308, 1
        %v664 = vsel %vm484, %v662, %v663
        %v665 = vrot.slane %v309, 1
        %v666 = vsel %vm484, %v663, %v665
        %667 = vrot.lane.b32.xlu0 %v497, 28
        %v668 = vpop.permute.xlu0 %667
        %669 = vrot.lane.b32.xlu0 %v499, 28
        %v670 = vpop.permute.xlu0 %669
        %671 = vrot.lane.b32.xlu0 %v502, 28
        %v672 = vpop.permute.xlu0 %671
        %673 = vrot.lane.b32.xlu0 %v504, 28
        %v674 = vpop.permute.xlu0 %673
        %675 = vrot.lane.b32.xlu0 %v507, 28
        %v676 = vpop.permute.xlu0 %675
        %677 = vrot.lane.b32.xlu0 %v509, 28
        %v678 = vpop.permute.xlu0 %677
        %679 = vrot.lane.b32.xlu0 %v512, 28
        %v680 = vpop.permute.xlu0 %679
        %681 = vrot.lane.b32.xlu0 %v514, 28
        %v682 = vpop.permute.xlu0 %681
        %683 = vrot.lane.b32.xlu0 %v517, 28
        %v684 = vpop.permute.xlu0 %683
        %685 = vrot.lane.b32.xlu0 %v519, 28
        %v686 = vpop.permute.xlu0 %685
        %687 = vrot.lane.b32.xlu0 %v522, 28
        %v688 = vpop.permute.xlu0 %687
        %689 = vrot.lane.b32.xlu0 %v524, 28
        %v690 = vpop.permute.xlu0 %689
        %691 = vrot.lane.b32.xlu0 %v593, 28
        %v692 = vpop.permute.xlu0 %691
        %693 = vrot.lane.b32.xlu0 %v595, 28
        %v694 = vpop.permute.xlu0 %693
        %695 = vrot.lane.b32.xlu0 %v664, 28
        %v696 = vpop.permute.xlu0 %695
        %697 = vrot.lane.b32.xlu0 %v666, 28
        %v698 = vpop.permute.xlu0 %697
        %vm715 = vcmask 261344
        %716 = vst.msk [vmem:[#allocation3] sm:$0xff] %vm715, %v668
        %717 = vst.msk [vmem:[#allocation3 + $0x8] sm:$0xff] %vm715, %v670
        %718 = vst.msk [vmem:[#allocation3 + $0x10] sm:$0xff] %vm715, %v672
        %719 = vst.msk [vmem:[#allocation3 + $0x18] sm:$0xff] %vm715, %v674
        %720 = vst.msk [vmem:[#allocation3 + $0x20] sm:$0xff] %vm715, %v676
        %721 = vst.msk [vmem:[#allocation3 + $0x28] sm:$0xff] %vm715, %v678
        %722 = vst.msk [vmem:[#allocation3 + $0x30] sm:$0xff] %vm715, %v680
        %723 = vst.msk [vmem:[#allocation3 + $0x38] sm:$0xff] %vm715, %v682
        %724 = vst.msk [vmem:[#allocation3 + $0x40] sm:$0xff] %vm715, %v684
        %725 = vst.msk [vmem:[#allocation3 + $0x48] sm:$0xff] %vm715, %v686
        %726 = vst.msk [vmem:[#allocation3 + $0x50] sm:$0xff] %vm715, %v688
        %727 = vst.msk [vmem:[#allocation3 + $0x58] sm:$0xff] %vm715, %v690
        %728 = vst.msk [vmem:[#allocation3 + $0x60] sm:$0xff] %vm715, %v692
        %729 = vst.msk [vmem:[#allocation3 + $0x68] sm:$0xff] %vm715, %v694
        %730 = vst.msk [vmem:[#allocation3 + $0x70] sm:$0xff] %vm715, %v696
        %731 = vst.msk [vmem:[#allocation3 + $0x78] sm:$0xff] %vm715, %v698
        %vm732 = vcmask 1045504
        %v733 = vrot.slane %v280, 2
        %v734 = vrot.slane %v281, 2
        %v735 = vsel %vm732, %v733, %v734
        %v736 = vrot.slane %v282, 2
        %v737 = vsel %vm732, %v734, %v736
        %v738 = vrot.slane %v283, 2
        %v739 = vrot.slane %v284, 2
        %v740 = vsel %vm732, %v738, %v739
        %v741 = vrot.slane %v285, 2
        %v742 = vsel %vm732, %v739, %v741
        %v743 = vrot.slane %v286, 2
        %v744 = vrot.slane %v287, 2
        %v745 = vsel %vm732, %v743, %v744
        %v746 = vrot.slane %v288, 2
        %v747 = vsel %vm732, %v744, %v746
        %v748 = vrot.slane %v289, 2
        %v749 = vrot.slane %v290, 2
        %v750 = vsel %vm732, %v748, %v749
        %v751 = vrot.slane %v291, 2
        %v752 = vsel %vm732, %v749, %v751
        %v753 = vrot.slane %v292, 2
        %v754 = vrot.slane %v293, 2
        %v755 = vsel %vm732, %v753, %v754
        %v756 = vrot.slane %v294, 2
        %v757 = vsel %vm732, %v754, %v756
        %v758 = vrot.slane %v295, 2
        %v759 = vrot.slane %v296, 2
        %v760 = vsel %vm732, %v758, %v759
        %v761 = vrot.slane %v297, 2
        %v762 = vsel %vm732, %v759, %v761
        %v763 = vrot.slane %v298, 2
        %v764 = vrot.slane %v299, 2
        %v765 = vsel %vm732, %v763, %v764
        %v766 = vrot.slane %v300, 2
        %v767 = vsel %vm732, %v764, %v766
        %v768 = vrot.slane %v301, 2
        %v769 = vrot.slane %v302, 2
        %v770 = vsel %vm732, %v768, %v769
        %v771 = vrot.slane %v303, 2
        %v772 = vsel %vm732, %v769, %v771
        %773 = vrot.lane.b32.xlu0 %v735, 8
        %v774 = vpop.permute.xlu0 %773
        %775 = vrot.lane.b32.xlu0 %v737, 8
        %v776 = vpop.permute.xlu0 %775
        %777 = vrot.lane.b32.xlu0 %v740, 8
        %v778 = vpop.permute.xlu0 %777
        %779 = vrot.lane.b32.xlu0 %v742, 8
        %v780 = vpop.permute.xlu0 %779
        %781 = vrot.lane.b32.xlu0 %v745, 8
        %v782 = vpop.permute.xlu0 %781
        %783 = vrot.lane.b32.xlu0 %v747, 8
        %v784 = vpop.permute.xlu0 %783
        %785 = vrot.lane.b32.xlu0 %v750, 8
        %v786 = vpop.permute.xlu0 %785
        %787 = vrot.lane.b32.xlu0 %v752, 8
        %v788 = vpop.permute.xlu0 %787
        %789 = vrot.lane.b32.xlu0 %v755, 8
        %v790 = vpop.permute.xlu0 %789
        %791 = vrot.lane.b32.xlu0 %v757, 8
        %v792 = vpop.permute.xlu0 %791
        %793 = vrot.lane.b32.xlu0 %v760, 8
        %v794 = vpop.permute.xlu0 %793
        %795 = vrot.lane.b32.xlu0 %v762, 8
        %v796 = vpop.permute.xlu0 %795
        %797 = vrot.lane.b32.xlu0 %v765, 8
        %v798 = vpop.permute.xlu0 %797
        %799 = vrot.lane.b32.xlu0 %v767, 8
        %v800 = vpop.permute.xlu0 %799
        %801 = vrot.lane.b32.xlu0 %v770, 8
        %v802 = vpop.permute.xlu0 %801
        %803 = vrot.lane.b32.xlu0 %v772, 8
        %v804 = vpop.permute.xlu0 %803
        %vm821 = vcmask 97344
        %822 = vst.msk [vmem:[#allocation3] sm:$0xff] %vm821, %v774
        %823 = vst.msk [vmem:[#allocation3 + $0x8] sm:$0xff] %vm821, %v776
        %824 = vst.msk [vmem:[#allocation3 + $0x10] sm:$0xff] %vm821, %v778
        %825 = vst.msk [vmem:[#allocation3 + $0x18] sm:$0xff] %vm821, %v780
        %826 = vst.msk [vmem:[#allocation3 + $0x20] sm:$0xff] %vm821, %v782
        %827 = vst.msk [vmem:[#allocation3 + $0x28] sm:$0xff] %vm821, %v784
        %828 = vst.msk [vmem:[#allocation3 + $0x30] sm:$0xff] %vm821, %v786
        %829 = vst.msk [vmem:[#allocation3 + $0x38] sm:$0xff] %vm821, %v788
        %830 = vst.msk [vmem:[#allocation3 + $0x40] sm:$0xff] %vm821, %v790
        %831 = vst.msk [vmem:[#allocation3 + $0x48] sm:$0xff] %vm821, %v792
        %832 = vst.msk [vmem:[#allocation3 + $0x50] sm:$0xff] %vm821, %v794
        %833 = vst.msk [vmem:[#allocation3 + $0x58] sm:$0xff] %vm821, %v796
        %834 = vst.msk [vmem:[#allocation3 + $0x60] sm:$0xff] %vm821, %v798
        %835 = vst.msk [vmem:[#allocation3 + $0x68] sm:$0xff] %vm821, %v800
        %836 = vst.msk [vmem:[#allocation3 + $0x70] sm:$0xff] %vm821, %v802
        %837 = vst.msk [vmem:[#allocation3 + $0x78] sm:$0xff] %vm821, %v804
        %v838 = vrot.slane %v304, 2
        %v839 = vrot.slane %v305, 2
        %v840 = vsel %vm732, %v838, %v839
        %v841 = vrot.slane %v306, 2
        %v842 = vsel %vm732, %v839, %v841
        %843 = vrot.lane.b32.xlu0 %v740, 20
        %v844 = vpop.permute.xlu0 %843
        %845 = vrot.lane.b32.xlu0 %v742, 20
        %v846 = vpop.permute.xlu0 %845
        %847 = vrot.lane.b32.xlu0 %v745, 20
        %v848 = vpop.permute.xlu0 %847
        %849 = vrot.lane.b32.xlu0 %v747, 20
        %v850 = vpop.permute.xlu0 %849
        %851 = vrot.lane.b32.xlu0 %v750, 20
        %v852 = vpop.permute.xlu0 %851
        %853 = vrot.lane.b32.xlu0 %v752, 20
        %v854 = vpop.permute.xlu0 %853
        %855 = vrot.lane.b32.xlu0 %v755, 20
        %v856 = vpop.permute.xlu0 %855
        %857 = vrot.lane.b32.xlu0 %v757, 20
        %v858 = vpop.permute.xlu0 %857
        %859 = vrot.lane.b32.xlu0 %v760, 20
        %v860 = vpop.permute.xlu0 %859
        %861 = vrot.lane.b32.xlu0 %v762, 20
        %v862 = vpop.permute.xlu0 %861
        %863 = vrot.lane.b32.xlu0 %v765, 20
        %v864 = vpop.permute.xlu0 %863
        %865 = vrot.lane.b32.xlu0 %v767, 20
        %v866 = vpop.permute.xlu0 %865
        %867 = vrot.lane.b32.xlu0 %v770, 20
        %v868 = vpop.permute.xlu0 %867
        %869 = vrot.lane.b32.xlu0 %v772, 20
        %v870 = vpop.permute.xlu0 %869
        %871 = vrot.lane.b32.xlu0 %v840, 20
        %v872 = vpop.permute.xlu0 %871
        %873 = vrot.lane.b32.xlu0 %v842, 20
        %v874 = vpop.permute.xlu0 %873
        %vm891 = vcmask 195744
        %892 = vst.msk [vmem:[#allocation3] sm:$0xff] %vm891, %v844
        %893 = vst.msk [vmem:[#allocation3 + $0x8] sm:$0xff] %vm891, %v846
        %894 = vst.msk [vmem:[#allocation3 + $0x10] sm:$0xff] %vm891, %v848
        %895 = vst.msk [vmem:[#allocation3 + $0x18] sm:$0xff] %vm891, %v850
        %896 = vst.msk [vmem:[#allocation3 + $0x20] sm:$0xff] %vm891, %v852
        %897 = vst.msk [vmem:[#allocation3 + $0x28] sm:$0xff] %vm891, %v854
        %898 = vst.msk [vmem:[#allocation3 + $0x30] sm:$0xff] %vm891, %v856
        %899 = vst.msk [vmem:[#allocation3 + $0x38] sm:$0xff] %vm891, %v858
        %900 = vst.msk [vmem:[#allocation3 + $0x40] sm:$0xff] %vm891, %v860
        %901 = vst.msk [vmem:[#allocation3 + $0x48] sm:$0xff] %vm891, %v862
        %902 = vst.msk [vmem:[#allocation3 + $0x50] sm:$0xff] %vm891, %v864
        %903 = vst.msk [vmem:[#allocation3 + $0x58] sm:$0xff] %vm891, %v866
        %904 = vst.msk [vmem:[#allocation3 + $0x60] sm:$0xff] %vm891, %v868
        %905 = vst.msk [vmem:[#allocation3 + $0x68] sm:$0xff] %vm891, %v870
        %906 = vst.msk [vmem:[#allocation3 + $0x70] sm:$0xff] %vm891, %v872
        %907 = vst.msk [vmem:[#allocation3 + $0x78] sm:$0xff] %vm891, %v874
        %v908 = vrot.slane %v307, 2
        %v909 = vrot.slane %v308, 2
        %v910 = vsel %vm732, %v908, %v909
        %v911 = vrot.slane %v309, 2
        %v912 = vsel %vm732, %v909, %v911
        %913 = vrot.lane.b32.xlu0 %v745, 32
        %v914 = vpop.permute.xlu0 %913
        %915 = vrot.lane.b32.xlu0 %v747, 32
        %v916 = vpop.permute.xlu0 %915
        %917 = vrot.lane.b32.xlu0 %v750, 32
        %v918 = vpop.permute.xlu0 %917
        %919 = vrot.lane.b32.xlu0 %v752, 32
        %v920 = vpop.permute.xlu0 %919
        %921 = vrot.lane.b32.xlu0 %v755, 32
        %v922 = vpop.permute.xlu0 %921
        %923 = vrot.lane.b32.xlu0 %v757, 32
        %v924 = vpop.permute.xlu0 %923
        %925 = vrot.lane.b32.xlu0 %v760, 32
        %v926 = vpop.permute.xlu0 %925
        %927 = vrot.lane.b32.xlu0 %v762, 32
        %v928 = vpop.permute.xlu0 %927
        %929 = vrot.lane.b32.xlu0 %v765, 32
        %v930 = vpop.permute.xlu0 %929
        %931 = vrot.lane.b32.xlu0 %v767, 32
        %v932 = vpop.permute.xlu0 %931
        %933 = vrot.lane.b32.xlu0 %v770, 32
        %v934 = vpop.permute.xlu0 %933
        %935 = vrot.lane.b32.xlu0 %v772, 32
        %v936 = vpop.permute.xlu0 %935
        %937 = vrot.lane.b32.xlu0 %v840, 32
        %v938 = vpop.permute.xlu0 %937
        %939 = vrot.lane.b32.xlu0 %v842, 32
        %v940 = vpop.permute.xlu0 %939
        %941 = vrot.lane.b32.xlu0 %v910, 32
        %v942 = vpop.permute.xlu0 %941
        %943 = vrot.lane.b32.xlu0 %v912, 32
        %v944 = vpop.permute.xlu0 %943
        %vm961 = vcmask 294144
        %962 = vst.msk [vmem:[#allocation3] sm:$0xff] %vm961, %v914
        %963 = vst.msk [vmem:[#allocation3 + $0x8] sm:$0xff] %vm961, %v916
        %964 = vst.msk [vmem:[#allocation3 + $0x10] sm:$0xff] %vm961, %v918
        %965 = vst.msk [vmem:[#allocation3 + $0x18] sm:$0xff] %vm961, %v920
        %966 = vst.msk [vmem:[#allocation3 + $0x20] sm:$0xff] %vm961, %v922
        %967 = vst.msk [vmem:[#allocation3 + $0x28] sm:$0xff] %vm961, %v924
        %968 = vst.msk [vmem:[#allocation3 + $0x30] sm:$0xff] %vm961, %v926
        %969 = vst.msk [vmem:[#allocation3 + $0x38] sm:$0xff] %vm961, %v928
        %970 = vst.msk [vmem:[#allocation3 + $0x40] sm:$0xff] %vm961, %v930
        %971 = vst.msk [vmem:[#allocation3 + $0x48] sm:$0xff] %vm961, %v932
        %972 = vst.msk [vmem:[#allocation3 + $0x50] sm:$0xff] %vm961, %v934
        %973 = vst.msk [vmem:[#allocation3 + $0x58] sm:$0xff] %vm961, %v936
        %974 = vst.msk [vmem:[#allocation3 + $0x60] sm:$0xff] %vm961, %v938
        %975 = vst.msk [vmem:[#allocation3 + $0x68] sm:$0xff] %vm961, %v940
        %976 = vst.msk [vmem:[#allocation3 + $0x70] sm:$0xff] %vm961, %v942
        %977 = vst.msk [vmem:[#allocation3 + $0x78] sm:$0xff] %vm961, %v944
        %v978 = vld [vmem:[%s1] sm:$0xff]
        %v979 = vld [vmem:[#allocation3] sm:$0xff]
        %v980 = vld [vmem:[#allocation3 + $0x8] sm:$0xff]
        %v981 = vld [vmem:[#allocation3 + $0x10] sm:$0xff]
        %v982 = vld [vmem:[#allocation3 + $0x18] sm:$0xff]
        %v983 = vld [vmem:[#allocation3 + $0x20] sm:$0xff]
        %v984 = vld [vmem:[#allocation3 + $0x28] sm:$0xff]
        %v985 = vld [vmem:[#allocation3 + $0x30] sm:$0xff]
        %v986 = vld [vmem:[#allocation3 + $0x38] sm:$0xff]
        %v987 = vld [vmem:[#allocation3 + $0x40] sm:$0xff]
        %v988 = vld [vmem:[#allocation3 + $0x48] sm:$0xff]
        %v989 = vld [vmem:[#allocation3 + $0x50] sm:$0xff]
        %v990 = vld [vmem:[#allocation3 + $0x58] sm:$0xff]
        %v991 = vld [vmem:[#allocation3 + $0x60] sm:$0xff]
        %v992 = vld [vmem:[#allocation3 + $0x68] sm:$0xff]
        %v993 = vld [vmem:[#allocation3 + $0x70] sm:$0xff]
        %v994 = vld [vmem:[#allocation3 + $0x78] sm:$0xff]
        %vm995 = vcmask 293888
        %v997 = vsel %vm995, %v978, 0
        %v1000 = vsel %vm995, %v979, 0
        %v1003 = vsel %vm995, %v980, 0
        %v1006 = vsel %vm995, %v981, 0
        %v1009 = vsel %vm995, %v982, 0
        %v1012 = vsel %vm995, %v983, 0
        %v1015 = vsel %vm995, %v984, 0
        %v1018 = vsel %vm995, %v985, 0
        %v1021 = vsel %vm995, %v986, 0
        %v1024 = vsel %vm995, %v987, 0
        %v1027 = vsel %vm995, %v988, 0
        %v1030 = vsel %vm995, %v989, 0
        %v1033 = vsel %vm995, %v990, 0
        %v1036 = vsel %vm995, %v991, 0
        %v1039 = vsel %vm995, %v992, 0
        %v1042 = vsel %vm995, %v993, 0
        %v1045 = vsel %vm995, %v994, 0
        %1047 = vmatpush.xpose.msra.mxu0 %v1045
        %1048 = vmatpush.xpose.msra.mxu0 %v1042
        %1049 = vmatpush.xpose.msra.mxu0 %v1039
        %1050 = vmatpush.xpose.msra.mxu0 %v1036
        %1051 = vmatpush.xpose.msra.mxu0 %v1033
        %1052 = vmatpush.xpose.msra.mxu0 %v1030
        %1053 = vmatpush.xpose.msra.mxu0 %v1027
        %1054 = vmatpush.xpose.msra.mxu0 %v1024
        %1055 = vmatpush.xpose.msra.mxu0 %v1021
        %1056 = vmatpush.xpose.msra.mxu0 %v1018
        %1057 = vmatpush.xpose.msra.mxu0 %v1015
        %1058 = vmatpush.xpose.msra.mxu0 %v1012
        %1059 = vmatpush.xpose.msra.mxu0 %v1009
        %1060 = vmatpush.xpose.msra.mxu0 %v1006
        %1061 = vmatpush.xpose.msra.mxu0 %v1003
        %1062 = vmatpush.xpose.msra.mxu0 %v1000
        %1063 = vmatmul.f32.gmra.mxu0 %v997
        %v1064 = vpop.f32.mrf.mxu0
        %v1065 = vadd.f32 0.0, %v1064
        %1066 = vdwg.mxu0
        %1067 = vst [vmem:[%s150] sm:$0xff] %v1065
        %s1068 = sand.u32 %s85, 1
        %s1069 = scalar_lea.sflag [#allocation5], %s1068
        %s1070 = sand.u32 %s85, 1
        %s1071 = smul.addr %s1070, 8
        %s1072 = scalar_lea.vmem [#allocation4], %s1071
        // Predicated region
        $region29: #{tpu_custom_call.1} parent=27 // pred_check
          %p1073 = pneg %p95
        $region30: #{tpu_custom_call.1} parent=27 // pred_check_branch
          %1075 = sbr.rel (%p1073) target = $region32
        $region31: #{tpu_custom_call.1} parent=27 // pred_region
          %1077 = vsyncadd %s1069, 0
          %s1078 = smul.addr %s20, 2
          %s1079 = sadd.s32 %s21, %s1078
          %s1080 = smul.addr %s1079, 8
          %s1081 = scalar_lea.hbm %s2, %s1080
          %s1083 = sshll.u32 %s1072, 4
          %s1084 = int_to_ptr.vmem [resolvable:$true] %s1083
          %s1085 = sshll.u32 %s1081, 4
          %s1086 = int_to_ptr.hbm [resolvable:$true] %s1085
          %1088 = dma.vmem_to_hbm [thread:$0]  %s1084, 128, %s1086, %s1069
        $region32: #{tpu_custom_call.1} parent=27 // pred_fallthru
          _
      $region28: #{tpu_custom_call.1} parent=5 // pred_fallthru
        _
      %p1089 = scmp.le.s32.totalorder 2, %s11
      // Predicated region
      $region33: #{tpu_custom_call.1} parent=5 // pred_check
        %p1090 = pneg %p1089
      $region34: #{tpu_custom_call.1} parent=5 // pred_check_branch
        %1092 = sbr.rel (%p1090) target = $region36
      $region35: #{tpu_custom_call.1} parent=5 // pred_region
        %s1093 = ssub.s32 %s11, 2
        // Predicated region
        $region37: #{tpu_custom_call.1} parent=35 // pred_check
          %p1094 = pneg %p101
        $region38: #{tpu_custom_call.1} parent=35 // pred_check_branch
          %1096 = sbr.rel (%p1094) target = $region40
        $region39: #{tpu_custom_call.1} parent=35 // pred_region
          %s1097 = sand.u32 %s86, 1
          %s1098 = scalar_lea.sflag [#allocation5], %s1097
          %s1099 = sand.u32 %s86, 1
          %s1100 = smul.addr %s1099, 8
          %s1101 = scalar_lea.vmem [#allocation4], %s1100
          %1103 = dma.done %s1098, 128
        $region40: #{tpu_custom_call.1} parent=35 // pred_fallthru
          _
      $region36: #{tpu_custom_call.1} parent=5 // pred_fallthru
        _
    $region6: #{tpu_custom_call.1} parent=1 // loop_footer
      %s15 = sadd.s32 1, %s11
    $region7: #{tpu_custom_call.1} parent=1 // loop_footer_branch
      %10 = sbr.rel target = $region3
    $region8: #{tpu_custom_call.1} parent=1 // loop_exit
      _
    %1104 = vsyncpa [#allocation5], 1
    %s1105 = scalar_lea.sflag [#allocation5], 1
    %1106 = vsyncpa %s1105, 1

</llo_original>
